<compile_context>
chip_gen: v5e
topology: v5e:2x2
jax: 0.10.0
libtpu: 0.0.40
codegen_flags: <defaults>
</compile_context>

<pallas_src>
import functools
import math

import jax
import jax.numpy as jnp
from jax.experimental import pallas as pl
from jax.experimental.pallas import tpu as pltpu


# ----------------------------- helpers ---------------------------------------

_MIB = 1024 * 1024
_TM_CAP, _TK_CAP, _TN_CAP = 4096, 4096, 2048


def _round_up(x, m):
    return ((x + m - 1) // m) * m


def _vmem_capacity_bytes():
    """Physical VMEM of the local TPU generation; conservative (v7x) default."""
    try:
        return int(pltpu.get_tpu_info().vmem_capacity_bytes)
    except Exception:
        return 64 * _MIB


def _lane_tile_candidates(dim, cap):
    """Tile sizes for a lane-major (last) dimension that never force padding:
    the full extent (always a legal block shape) plus 128-multiples that divide
    `dim` exactly, in descending order.  A padded tile is the fallback only
    when neither exists (dim > cap and dim % 128 != 0 — rare)."""
    cands = []
    if dim <= cap:
        cands.append(dim)
    if dim % 128 == 0:
        t = min(dim, cap)
        t -= t % 128
        while t >= 128:
            if dim % t == 0 and t not in cands:
                cands.append(t)
            t -= 128
    if not cands:
        cands.append(min(_round_up(dim, 128), cap))
    return cands


def _m_tile_candidates(M, sublane, cap):
    """M tiles (sublane-aligned), largest (covers all of M) first."""
    t = min(_round_up(M, sublane), cap)
    cands = [t]
    while t > sublane:
        t = max(sublane, _round_up((t + 1) // 2, sublane))
        if t != cands[-1]:
            cands.append(t)
    return cands


def _choose_tiles(M, K, N, x_item, w_item, o_item, budget):
    """Pick (tm, tk, tn, sublane).

    Priorities: (1) cover all of K in one block (drops the reduction grid axis
    and the f32 accumulator), (2) cover all of M (the big weight is then
    streamed from HBM exactly once), (3) the widest lane-dense N tile that
    still fits the budget.  K/N tiles never force a weight pad in the common
    case (see _lane_tile_candidates)."""
    sublane = max(8, 32 // max(1, x_item))      # 8 f32 / 16 bf16 / 32 int8
    tk_cands = _lane_tile_candidates(K, _TK_CAP)
    tn_cands = _lane_tile_candidates(N, _TN_CAP)
    tm_cands = _m_tile_candidates(M, sublane, _TM_CAP)

    def footprint(tm, tk, tn):
        a = tm * tk * x_item
        w = tk * tn * w_item
        o = tm * tn * o_item
        acc = tm * tn * 4 if tk < K else 0      # accumulator only when K split
        # double-buffered A/W/out + one extra buffer for the Buffered(3) stream
        return 2 * (a + w + o) + max(a, w) + acc

    for tk in tk_cands:
        for tm in tm_cands:
            for tn in tn_cands:
                if footprint(tm, tk, tn) <= budget:
                    return tm, tk, tn, sublane
    return tm_cands[-1], tk_cands[-1], tn_cands[-1], sublane


# ----------------------------- Pallas kernels --------------------------------

def _matmul_kernel_single_k(x_ref, w_ref, o_ref, *, mxu_dtype=None):
    # K fits in one block: no accumulator, no init/finalize control flow.
    a = x_ref[...]
    b = w_ref[...]
    if mxu_dtype is not None:
        a = a.astype(mxu_dtype)
        b = b.astype(mxu_dtype)
    o_ref[...] = jnp.dot(a, b, preferred_element_type=jnp.float32).astype(o_ref.dtype)


def _matmul_kernel_acc(x_ref, w_ref, o_ref, acc_ref, *, mxu_dtype=None):
    # grid = (M//tm, N//tn, K//tk); reduction axis (k) is last.
    @pl.when(pl.program_id(2) == 0)
    def _():
        acc_ref[...] = jnp.zeros_like(acc_ref)

    a = x_ref[...]
    b = w_ref[...]
    if mxu_dtype is not None:
        a = a.astype(mxu_dtype)
        b = b.astype(mxu_dtype)
    acc_ref[...] += jnp.dot(a, b, preferred_element_type=jnp.float32)

    @pl.when(pl.program_id(2) == pl.num_programs(2) - 1)
    def _():
        o_ref[...] = acc_ref[...].astype(o_ref.dtype)


# ----------------------------- forward wrapper --------------------------------

def metric_func_forward(embeddings, kernel, *, tm=None, tk=None, tn=None,
                        mxu_dtype=None, vmem_budget_bytes=None):
    """output = embeddings @ kernel, computed with a tiled Pallas matmul.

    `label` from the PyTorch forward is unused and therefore not an argument.
    Tiles are chosen automatically unless overridden.  The weight is never
    padded per call except in a rare non-tileable fallback.
    """
    M, K = embeddings.shape
    K2, N = kernel.shape
    assert K == K2, "in_features mismatch"

    out_dtype = jnp.promote_types(embeddings.dtype, kernel.dtype)
    x_item = jnp.dtype(embeddings.dtype).itemsize
    w_item = jnp.dtype(kernel.dtype).itemsize
    o_item = jnp.dtype(out_dtype).itemsize

    vmem_cap = _vmem_capacity_bytes()
    if vmem_budget_bytes is None:
        # ~60 MiB tile budget on v5e/v6e (128 MiB VMEM), ~28 MiB on v7x
        # (64 MiB VMEM): leave roughly half of VMEM for Mosaic / compiler slack.
        vmem_budget_bytes = max(16 * _MIB, vmem_cap // 2 - 4 * _MIB)

    a_tm, a_tk, a_tn, sublane = _choose_tiles(
        M, K, N, x_item, w_item, o_item, vmem_budget_bytes)
    tm_user = tm is not None
    tm = a_tm if tm is None else tm
    tk = a_tk if tk is None else tk
    tn = a_tn if tn is None else tn

    # v7x has 2 TensorCores sharing 'parallel' grid axes: if the whole problem
    # is a single block, split the M tile so both cores get work.  Only the
    # cheap-to-pad embeddings operand is affected, never the weight.
    if (not tm_user and tm >= M and tn >= N
            and _round_up(M, sublane) >= 2 * sublane):
        half = max(sublane, _round_up((tm + 1) // 2, sublane))
        if half < tm:
            tm = half

    # ---- padding (the weight is only padded on the rare fallback path) ------
    Mp = _round_up(M, tm)
    Kp = K if K % tk == 0 else _round_up(K, tk)
    Np = N if N % tn == 0 else _round_up(N, tn)

    x, w = embeddings, kernel
    if (Mp, Kp) != (M, K):
        x = jnp.pad(x, ((0, Mp - M), (0, Kp - K)))
    if (Kp, Np) != (K, N):
        # TODO(synk): rare fallback (K or N huge and not a 128-multiple);
        # prefer padding the parameter once at init instead of per call.
        w = jnp.pad(w, ((0, Kp - K), (0, Np - N)))

    gm, gn, gk = Mp // tm, Np // tn, Kp // tk

    # ---- VMEM limit hint from the actual block footprint --------------------
    a_bytes = tm * tk * x_item
    w_bytes = tk * tn * w_item
    o_bytes = tm * tn * o_item
    footprint = 2 * (a_bytes + w_bytes + o_bytes) + max(a_bytes, w_bytes)
    if gk > 1:
        footprint += tm * tn * 4
    hard_cap = vmem_cap - 8 * _MIB            # never hand Mosaic the whole VMEM
    if footprint > hard_cap:
        raise ValueError(
            f"tile footprint {footprint / 2**20:.1f} MiB exceeds the safe VMEM "
            f"cap {hard_cap / 2**20:.1f} MiB; use smaller tm/tk/tn overrides")
    vmem_limit = min(hard_cap, max(footprint + 8 * _MIB, 32 * _MIB))

    cost = pl.CostEstimate(
        flops=2 * M * K * N,
        transcendentals=0,
        bytes_accessed=M * K * x_item + K * N * w_item + M * N * o_item)

    if gk == 1:
        # Single-K fast path: no reduction axis, no accumulator scratch.
        # Grid-order choice: the operand tied to the *outer* axis is fetched
        # from HBM exactly once; the other is re-streamed once per outer step.
        a_full = Mp * Kp * x_item
        w_full = Kp * Np * w_item
        m_outer = (a_full + gm * w_full) <= (w_full + gn * a_full)
        inner_steps = gn if m_outer else gm
        # Triple-buffer the streamed (inner-varying) operand so its next DMA is
        # already in flight while the current block is still on the MXU.
        stream = {"pipeline_mode": pl.Buffered(3)} if inner_steps >= 3 else {}
        if m_outer:
            grid = (gm, gn)
            a_spec = pl.BlockSpec((tm, Kp), lambda i, j: (i, 0))
            w_spec = pl.BlockSpec((Kp, tn), lambda i, j: (0, j), **stream)
            o_spec = pl.BlockSpec((tm, tn), lambda i, j: (i, j))
        else:
            grid = (gn, gm)
            a_spec = pl.BlockSpec((tm, Kp), lambda j, i: (i, 0), **stream)
            w_spec = pl.BlockSpec((Kp, tn), lambda j, i: (0, j))
            o_spec = pl.BlockSpec((tm, tn), lambda j, i: (i, j))
        out = pl.pallas_call(
            functools.partial(_matmul_kernel_single_k, mxu_dtype=mxu_dtype),
            out_shape=jax.ShapeDtypeStruct((Mp, Np), out_dtype),
            grid_spec=pltpu.PrefetchScalarGridSpec(
                num_scalar_prefetch=0, grid=grid,
                in_specs=[a_spec, w_spec], out_specs=o_spec),
            compiler_params=pltpu.CompilerParams(
                dimension_semantics=("parallel", "parallel"),
                vmem_limit_bytes=vmem_limit),
            cost_estimate=cost,
        )(x, w)
    else:
        out = pl.pallas_call(
            functools.partial(_matmul_kernel_acc, mxu_dtype=mxu_dtype),
            out_shape=jax.ShapeDtypeStruct((Mp, Np), out_dtype),
            grid_spec=pltpu.PrefetchScalarGridSpec(
                num_scalar_prefetch=0, grid=(gm, gn, gk),
                in_specs=[pl.BlockSpec((tm, tk), lambda i, j, k: (i, k)),
                          pl.BlockSpec((tk, tn), lambda i, j, k: (k, j))],
                out_specs=pl.BlockSpec((tm, tn), lambda i, j, k: (i, j)),
                scratch_shapes=[pltpu.VMEM((tm, tn), jnp.float32)]),
            compiler_params=pltpu.CompilerParams(
                dimension_semantics=("parallel", "parallel", "arbitrary"),
                vmem_limit_bytes=vmem_limit),
            cost_estimate=cost,
        )(x, w)

    if (Mp, Np) != (M, N):
        out = out[:M, :N]
    return out


# ------------------------- parameter initialization --------------------------

def xavier_uniform(key, in_features, out_features, dtype=jnp.float32):
    # torch.nn.init.xavier_uniform_ on a (in_features, out_features) tensor:
    # the bound only depends on fan_in + fan_out: sqrt(6 / (in + out)), gain=1.
    bound = math.sqrt(6.0 / (in_features + out_features))
    return jax.random.uniform(
        key, (in_features, out_features), dtype=dtype, minval=-bound, maxval=bound)


def l2_norm(x, axis=1, eps=1e-12):
    # matches torch.norm(input, 2, axis, keepdim=True) followed by div;
    # tiny eps guards the (unreachable with Xavier init) zero-norm case.
    norm = jnp.sqrt(jnp.sum(x * x, axis=axis, keepdims=True))
    return x / jnp.maximum(norm, eps)


def make_metric_func_params(key, in_features, out_features, kernel_norm=False):
    kernel = xavier_uniform(key, in_features, out_features)
    if kernel_norm:
        kernel = l2_norm(kernel, axis=0)
    return kernel


# ----------------------------------- main ------------------------------------

if __name__ == "__main__":
    key = jax.random.PRNGKey(0)
    k_param, k_emb, k_lbl = jax.random.split(key, 3)

    # --- primary (demo) shapes: single-block fast path ------------------------
    batch, in_features, out_features = 8, 128, 256
    kernel_norm = True

    kernel = make_metric_func_params(
        k_param, in_features, out_features, kernel_norm=kernel_norm)
    embeddings = jax.random.normal(k_emb, (batch, in_features), dtype=jnp.float32)
    # `label` is accepted by the PyTorch forward but never used.
    label = jax.random.randint(k_lbl, (batch,), 0, out_features)

    out = metric_func_forward(embeddings, kernel)
    jax.block_until_ready(out)
    assert out.shape == (batch, out_features)
    assert jnp.allclose(out, embeddings @ kernel, atol=1e-5, rtol=1e-5)

    # --- uneven shapes: full-extent K/N tiles, NO weight padding --------------
    k1, k2 = jax.random.split(k_emb)
    x2 = jax.random.normal(k1, (5, 96), dtype=jnp.float32)
    w2 = jax.random.normal(k2, (96, 200), dtype=jnp.float32) * 0.05
    out2 = metric_func_forward(x2, w2)
    jax.block_until_ready(out2)
    assert out2.shape == (5, 200)
    assert jnp.allclose(out2, x2 @ w2, atol=1e-5, rtol=1e-5)

    # --- forced K tiling: exercises the accumulator kernel --------------------
    k3, k4 = jax.random.split(k1)
    x3 = jax.random.normal(k3, (16, 256), dtype=jnp.float32)
    w3 = jax.random.normal(k4, (256, 128), dtype=jnp.float32) * 0.05
    out3 = metric_func_forward(x3, w3, tm=16, tn=128, tk=128)
    jax.block_until_ready(out3)
    assert jnp.allclose(out3, x3 @ w3, atol=1e-4, rtol=1e-5)

    # --- N-tiled fast path: weight streamed on the inner axis (Buffered(3)) ---
    k5, k6 = jax.random.split(k3)
    x4 = jax.random.normal(k5, (16, 128), dtype=jnp.float32)
    w4 = jax.random.normal(k6, (128, 512), dtype=jnp.float32) * 0.05
    out4 = metric_func_forward(x4, w4, tn=128)
    jax.block_until_ready(out4)
    assert jnp.allclose(out4, x4 @ w4, atol=1e-4, rtol=1e-5)

    # --- M- and N-tiled fast path: exercises the swapped (N-outer) grid order -
    k7, k8 = jax.random.split(k5)
    x5 = jax.random.normal(k7, (64, 128), dtype=jnp.float32)
    w5 = jax.random.normal(k8, (128, 512), dtype=jnp.float32) * 0.05
    out5 = metric_func_forward(x5, w5, tm=32, tn=128)
    jax.block_until_ready(out5)
    assert jnp.allclose(out5, x5 @ w5, atol=1e-4, rtol=1e-5)

    print("KERNEL_OK")
</pallas_src>

<mosaic_0001>
module attributes {stable_mosaic.version = 11 : i64} {
  func.func @_matmul_kernel_single_k(%arg0: i32, %arg1: i32, %arg2: memref<8x128xf32, #tpu.memory_space<vmem>>, %arg3: memref<128x256xf32, #tpu.memory_space<vmem>>, %arg4: memref<8x256xf32, #tpu.memory_space<vmem>>) attributes {dimension_semantics = [#tpu.dimension_semantics<parallel>, #tpu.dimension_semantics<parallel>], iteration_bounds = array<i64: 1, 1>, scalar_prefetch = 0 : i64, scratch_operands = 0 : i64, tpu.core_type = #tpu.core_type<tc>, window_params = [{transform_indices = @transform_0, window_bounds = array<i64: 8, 128>}, {transform_indices = @transform_1, window_bounds = array<i64: 128, 256>}, {transform_indices = @transform_2, window_bounds = array<i64: 8, 256>}]} {
    %c0 = arith.constant 0 : index
    %c0_0 = arith.constant 0 : index
    %0 = vector.load %arg2[%c0, %c0_0] : memref<8x128xf32, #tpu.memory_space<vmem>>, vector<8x128xf32>
    %c0_1 = arith.constant 0 : index
    %c0_2 = arith.constant 0 : index
    %1 = vector.load %arg3[%c0_1, %c0_2] : memref<128x256xf32, #tpu.memory_space<vmem>>, vector<128x256xf32>
    %cst = arith.constant dense<0.000000e+00> : vector<8x256xf32>
    %2 = tpu.matmul %0, %1, %cst {dimension_numbers = #tpu.dot_dimension_numbers<[1], [0], [0], [1], [0, 0, 1, 1], [], []>} : vector<8x128xf32>, vector<128x256xf32>, vector<8x256xf32> -> vector<8x256xf32>
    %c0_3 = arith.constant 0 : index
    %c0_4 = arith.constant 0 : index
    %3 = vector.load %arg4[%c0_3, %c0_4] : memref<8x256xf32, #tpu.memory_space<vmem>>, vector<8x256xf32>
    tpu.vector_store %arg4[%c0_3, %c0_4], %2 {strides = array<i32>} : memref<8x256xf32, #tpu.memory_space<vmem>>, vector<8x256xf32>,
    return
  }
  func.func @transform_0(%arg0: i32, %arg1: i32) -> (i32, i32) {
    %c0_i32 = arith.constant 0 : i32
    %c0_i32_0 = arith.constant 0 : i32
    return %arg0, %c0_i32 : i32, i32
  }
  func.func @transform_1(%arg0: i32, %arg1: i32) -> (i32, i32) {
    %c0_i32 = arith.constant 0 : i32
    %c0_i32_0 = arith.constant 0 : i32
    return %c0_i32, %arg1 : i32, i32
  }
  func.func @transform_2(%arg0: i32, %arg1: i32) -> (i32, i32) {
    %c0_i32 = arith.constant 0 : i32
    return %arg0, %arg1 : i32, i32
  }
}

</mosaic_0001>

<llo_original>
// kernel: tpu_custom_call.1
$region0: #{tpu_custom_call.1}
  #allocation0 [shape = 'u32[]', space=smem, size = 0x4, offset = 0x4, fixed_abs, tag = 'smem constant byte address 0x4 - core index']
  #allocation1 [shape = 'u32[72,128]{1,0:T(1,128)}', space=vmem, size = 0x9000, scoped, tag = 'internal scratch']
  %s0 = inlined_call_operand.hbm [shape: f32[8,128], index: 0, kind: input, shape index: {}]
  %s1 = inlined_call_operand.hbm [shape: f32[128,256], index: 1, kind: input, shape index: {}]
  %s2 = inlined_call_operand.hbm [shape: f32[8,256], index: 2, kind: output, shape index: {}]
  %s3 = sld [smem:[#allocation0]]
  $region26: #{tpu_custom_call.1} parent=0
    _
  %s5 = ssub.s32 1, %s3
  %s6 = scalar_select 0, %s5, %s3
  $region1: #{tpu_custom_call.1} parent=0
    #allocation2 [shape = 'u8[4096]{0}', space=vmem, size = 0x1000, scoped, tag = 'input window, operand 0, single buffered']
    #allocation3 [shape = 's32[1]{0}', space=sflag, size = 0x4, scoped, tag = 'scoped memory for tpu_custom_call.1']
    #allocation4 [shape = 's32[1]{0}', space=sflag, size = 0x4, scoped, tag = 'scoped memory for tpu_custom_call.1']
    #allocation5 [shape = 'u8[131072]{0}', space=vmem, size = 0x20000, scoped, tag = 'input window, operand 1, single buffered']
    #allocation6 [shape = 's32[1]{0}', space=sflag, size = 0x4, scoped, tag = 'scoped memory for tpu_custom_call.1']
    #allocation7 [shape = 'u8[8192]{0}', space=vmem, size = 0x2000, scoped, tag = 'output window, operand 0, single buffered']
    %7 = vsyncpa [#allocation3], 0
    %8 = vsyncpa [#allocation6], 0
    %9 = vsyncpa [#allocation4], 0
    // Predicated region
    $region2: #{tpu_custom_call.1} parent=1 // pred_check
      _
    $region3: #{tpu_custom_call.1} parent=1 // pred_check_branch
      %11 = sbr.rel (0) target = $region5
    $region4: #{tpu_custom_call.1} parent=1 // pred_region
      %13 = vsyncadd [#allocation3], 0
      %s15 = sshll.u32 %s0, 4
      %s16 = int_to_ptr.hbm [resolvable:$true] %s15
      %s17 = sshll.u32 [#allocation2], 4
      %s18 = int_to_ptr.vmem [resolvable:$true] %s17
      %20 = dma.hbm_to_vmem [thread:$0]  %s16, 128, %s18, [#allocation3]
    $region5: #{tpu_custom_call.1} parent=1 // pred_fallthru
      _
    // Predicated region
    $region6: #{tpu_custom_call.1} parent=1 // pred_check
      _
    $region7: #{tpu_custom_call.1} parent=1 // pred_check_branch
      %22 = sbr.rel (0) target = $region9
    $region8: #{tpu_custom_call.1} parent=1 // pred_region
      %24 = vsyncadd [#allocation6], 0
      %s25 = sshll.u32 %s1, 4
      %s26 = int_to_ptr.hbm [resolvable:$true] %s25
      %s27 = sshll.u32 [#allocation5], 4
      %s28 = int_to_ptr.vmem [resolvable:$true] %s27
      %33 = dma.hbm_to_vmem [thread:$0]  %s26, 4096, %s28, [#allocation6], 256, 256, 16
    $region9: #{tpu_custom_call.1} parent=1 // pred_fallthru
      _
    // Predicated region
    $region10: #{tpu_custom_call.1} parent=1 // pred_check
      _
    $region11: #{tpu_custom_call.1} parent=1 // pred_check_branch
      %35 = sbr.rel (0) target = $region13
    $region12: #{tpu_custom_call.1} parent=1 // pred_region
      %37 = dma.done [#allocation3], 128
    $region13: #{tpu_custom_call.1} parent=1 // pred_fallthru
      _
    // Predicated region
    $region14: #{tpu_custom_call.1} parent=1 // pred_check
      _
    $region15: #{tpu_custom_call.1} parent=1 // pred_check_branch
      %39 = sbr.rel (0) target = $region17
    $region16: #{tpu_custom_call.1} parent=1 // pred_region
      %41 = dma.done [#allocation6], 4096
    $region17: #{tpu_custom_call.1} parent=1 // pred_fallthru
      _
    %v42 = vld [vmem:[#allocation2] sm:$0xff]
    %v43 = vld [vmem:[#allocation5] sm:$0xff]
    %v44 = vld [vmem:[#allocation5 + $0x8] sm:$0xff]
    %v45 = vld [vmem:[#allocation5 + $0x10] sm:$0xff]
    %v46 = vld [vmem:[#allocation5 + $0x18] sm:$0xff]
    %v47 = vld [vmem:[#allocation5 + $0x20] sm:$0xff]
    %v48 = vld [vmem:[#allocation5 + $0x28] sm:$0xff]
    %v49 = vld [vmem:[#allocation5 + $0x30] sm:$0xff]
    %v50 = vld [vmem:[#allocation5 + $0x38] sm:$0xff]
    %v51 = vld [vmem:[#allocation5 + $0x40] sm:$0xff]
    %v52 = vld [vmem:[#allocation5 + $0x48] sm:$0xff]
    %v53 = vld [vmem:[#allocation5 + $0x50] sm:$0xff]
    %v54 = vld [vmem:[#allocation5 + $0x58] sm:$0xff]
    %v55 = vld [vmem:[#allocation5 + $0x60] sm:$0xff]
    %v56 = vld [vmem:[#allocation5 + $0x68] sm:$0xff]
    %v57 = vld [vmem:[#allocation5 + $0x70] sm:$0xff]
    %v58 = vld [vmem:[#allocation5 + $0x78] sm:$0xff]
    %v59 = vld [vmem:[#allocation5 + $0x80] sm:$0xff]
    %v60 = vld [vmem:[#allocation5 + $0x88] sm:$0xff]
    %v61 = vld [vmem:[#allocation5 + $0x90] sm:$0xff]
    %v62 = vld [vmem:[#allocation5 + $0x98] sm:$0xff]
    %v63 = vld [vmem:[#allocation5 + $0xa0] sm:$0xff]
    %v64 = vld [vmem:[#allocation5 + $0xa8] sm:$0xff]
    %v65 = vld [vmem:[#allocation5 + $0xb0] sm:$0xff]
    %v66 = vld [vmem:[#allocation5 + $0xb8] sm:$0xff]
    %v67 = vld [vmem:[#allocation5 + $0xc0] sm:$0xff]
    %v68 = vld [vmem:[#allocation5 + $0xc8] sm:$0xff]
    %v69 = vld [vmem:[#allocation5 + $0xd0] sm:$0xff]
    %v70 = vld [vmem:[#allocation5 + $0xd8] sm:$0xff]
    %v71 = vld [vmem:[#allocation5 + $0xe0] sm:$0xff]
    %v72 = vld [vmem:[#allocation5 + $0xe8] sm:$0xff]
    %v73 = vld [vmem:[#allocation5 + $0xf0] sm:$0xff]
    %v74 = vld [vmem:[#allocation5 + $0xf8] sm:$0xff]
    %75 = vmatpush.msra.mxu0 %v73
    %76 = vmatpush.msra.mxu0 %v71
    %77 = vmatpush.msra.mxu0 %v69
    %78 = vmatpush.msra.mxu0 %v67
    %79 = vmatpush.msra.mxu0 %v65
    %80 = vmatpush.msra.mxu0 %v63
    %81 = vmatpush.msra.mxu0 %v61
    %82 = vmatpush.msra.mxu0 %v59
    %83 = vmatpush.msra.mxu0 %v57
    %84 = vmatpush.msra.mxu0 %v55
    %85 = vmatpush.msra.mxu0 %v53
    %86 = vmatpush.msra.mxu0 %v51
    %87 = vmatpush.msra.mxu0 %v49
    %88 = vmatpush.msra.mxu0 %v47
    %89 = vmatpush.msra.mxu0 %v45
    %90 = vmatpush.msra.mxu0 %v43
    %91 = vmatmul.f32.gmra.mxu0 %v42
    %v92 = vpop.f32.mrf.mxu0
    %v93 = vadd.f32 0.0, %v92
    %94 = vdwg.mxu0
    %95 = vmatpush.msra.mxu0 %v74
    %96 = vmatpush.msra.mxu0 %v72
    %97 = vmatpush.msra.mxu0 %v70
    %98 = vmatpush.msra.mxu0 %v68
    %99 = vmatpush.msra.mxu0 %v66
    %100 = vmatpush.msra.mxu0 %v64
    %101 = vmatpush.msra.mxu0 %v62
    %102 = vmatpush.msra.mxu0 %v60
    %103 = vmatpush.msra.mxu0 %v58
    %104 = vmatpush.msra.mxu0 %v56
    %105 = vmatpush.msra.mxu0 %v54
    %106 = vmatpush.msra.mxu0 %v52
    %107 = vmatpush.msra.mxu0 %v50
    %108 = vmatpush.msra.mxu0 %v48
    %109 = vmatpush.msra.mxu0 %v46
    %110 = vmatpush.msra.mxu0 %v44
    %111 = vmatmul.f32.gmra.mxu0 %v42
    %v112 = vpop.f32.mrf.mxu0
    %v113 = vadd.f32 0.0, %v112
    %114 = vdwg.mxu0
    %115 = vst [vmem:[#allocation7] sm:$0xff] %v93
    %116 = vst [vmem:[#allocation7 + $0x8] sm:$0xff] %v113
    // Predicated region
    $region18: #{tpu_custom_call.1} parent=1 // pred_check
      _
    $region19: #{tpu_custom_call.1} parent=1 // pred_check_branch
      %118 = sbr.rel (0) target = $region21
    $region20: #{tpu_custom_call.1} parent=1 // pred_region
      %120 = vsyncadd [#allocation4], 0
      %s122 = sshll.u32 [#allocation7], 4
      %s123 = int_to_ptr.vmem [resolvable:$true] %s122
      %s124 = sshll.u32 %s2, 4
      %s125 = int_to_ptr.hbm [resolvable:$true] %s124
      %127 = dma.vmem_to_hbm [thread:$0]  %s123, 256, %s125, [#allocation4]
    $region21: #{tpu_custom_call.1} parent=1 // pred_fallthru
      _
    // Predicated region
    $region22: #{tpu_custom_call.1} parent=1 // pred_check
      _
    $region23: #{tpu_custom_call.1} parent=1 // pred_check_branch
      %129 = sbr.rel (0) target = $region25
    $region24: #{tpu_custom_call.1} parent=1 // pred_region
      %131 = dma.done [#allocation4], 256
    $region25: #{tpu_custom_call.1} parent=1 // pred_fallthru
      _
    %132 = vsyncpa [#allocation3], 1
    %133 = vsyncpa [#allocation6], 1
    %134 = vsyncpa [#allocation4], 1

</llo_original>
